<compile_context>
chip_gen: v6e
topology: v6e:2x2x1
jax: 0.10.0
libtpu: 0.0.40
codegen_flags: <defaults>
</compile_context>

<pallas_src>
import math

import jax
import jax.numpy as jnp
from jax.experimental import pallas as pl
from jax.experimental.pallas import tpu as pltpu


def _copy_kernel(x_ref, o_ref):
    # Pure lane-dense copy of one (tn, C) tile.
    o_ref[...] = x_ref[...]


def _squeezed_shape(shape):
    """Shape produced by torch.squeeze(torch.squeeze(x, -1), -1)."""
    out = list(shape)
    for _ in range(2):
        if out and out[-1] == 1:
            out.pop()
    return tuple(out)


def squeeze_reference(x):
    """The truly optimal implementation: a free metadata reshape."""
    return jnp.reshape(x, _squeezed_shape(x.shape))


def _choose_row_tile(n_rows, n_cols, itemsize, target_bytes=4 * 1024 * 1024):
    """Fixed large row tile: ~4 MiB per input tile, multiple of 8 rows.
    If the whole array is smaller than one tile, use the full row extent
    (block dim equal to the full array dim always satisfies the (8,128) rule).
    """
    rows = (target_bytes // max(1, n_cols * itemsize)) // 8 * 8
    rows = max(8, rows)
    if rows >= n_rows:
        return n_rows
    return rows


def squeeze(x):
    """Pallas equivalent of torch.squeeze(torch.squeeze(x, -1), -1)."""
    out_shape = _squeezed_shape(x.shape)

    # Degenerate cases (zero-size array, everything squeezed away): the op is
    # a pure metadata change, nothing for a kernel to do.
    total = math.prod(out_shape) if out_shape else 1
    if total == 0 or len(out_shape) == 0:
        return jnp.reshape(x, out_shape)

    # Free XLA-level reshape to a lane-dense 2-D view: (rows, C) with the
    # channel dim last.  Dropping trailing size-1 dims is metadata-only.
    n_cols = int(out_shape[-1])
    n_rows = total // n_cols
    x2 = jnp.reshape(x, (n_rows, n_cols))

    itemsize = jnp.dtype(x.dtype).itemsize
    tn = _choose_row_tile(n_rows, n_cols, itemsize)
    grid = (pl.cdiv(n_rows, tn),)

    out2 = pl.pallas_call(
        _copy_kernel,
        out_shape=jax.ShapeDtypeStruct((n_rows, n_cols), x.dtype),
        grid=grid,
        in_specs=[pl.BlockSpec((tn, n_cols), lambda i: (i, 0))],
        out_specs=pl.BlockSpec((tn, n_cols), lambda i: (i, 0)),
        # Output aliases the (reshaped) input buffer: no fresh HBM allocation.
        input_output_aliases={0: 0},
        compiler_params=pltpu.CompilerParams(
            dimension_semantics=("parallel",),
            # Explicit limit so double-buffered ~4 MiB in+out tiles fit on all
            # generations (v5e's default scoped VMEM is only 16 MiB).
            vmem_limit_bytes=64 * 1024 * 1024,
        ),
    )(x2)

    return jnp.reshape(out2, out_shape)


if __name__ == "__main__":
    key = jax.random.PRNGKey(0)
    k0, k1 = jax.random.split(key)

    # Primary shape consistent with the module's use: (batch=2, channels=4, 1, 1).
    x = jax.random.normal(k0, (2, 4, 1, 1), dtype=jnp.float32)
    out = jax.block_until_ready(squeeze(x))
    expected = squeeze_reference(x)
    assert out.shape == (2, 4), out.shape
    assert out.dtype == x.dtype
    assert bool(jnp.array_equal(out, expected)), "mismatch vs reference squeeze"

    # A second, lane-aligned check (C = 128).
    y = jax.random.normal(k1, (16, 128, 1, 1), dtype=jnp.float32)
    out_y = jax.block_until_ready(squeeze(y))
    assert out_y.shape == (16, 128), out_y.shape
    assert bool(jnp.array_equal(out_y, squeeze_reference(y))), "mismatch (case 2)"

    print("KERNEL_OK")
</pallas_src>

<mosaic_0001>
module attributes {stable_mosaic.version = 11 : i64} {
  func.func @_copy_kernel(%arg0: i32, %arg1: memref<2x4xf32, #tpu.memory_space<vmem>>, %arg2: memref<2x4xf32, #tpu.memory_space<vmem>>) attributes {dimension_semantics = [#tpu.dimension_semantics<parallel>], iteration_bounds = array<i64: 1>, scalar_prefetch = 0 : i64, scratch_operands = 0 : i64, tpu.core_type = #tpu.core_type<tc>, window_params = [{transform_indices = @transform_0, window_bounds = array<i64: 2, 4>}, {transform_indices = @transform_1, window_bounds = array<i64: 2, 4>}]} {
    %c0 = arith.constant 0 : index
    %c0_0 = arith.constant 0 : index
    %0 = vector.load %arg1[%c0, %c0_0] : memref<2x4xf32, #tpu.memory_space<vmem>>, vector<2x4xf32>
    %c0_1 = arith.constant 0 : index
    %c0_2 = arith.constant 0 : index
    %1 = vector.load %arg2[%c0_1, %c0_2] : memref<2x4xf32, #tpu.memory_space<vmem>>, vector<2x4xf32>
    tpu.vector_store %arg2[%c0_1, %c0_2], %0 {strides = array<i32>} : memref<2x4xf32, #tpu.memory_space<vmem>>, vector<2x4xf32>,
    return
  }
  func.func @transform_0(%arg0: i32) -> (i32, i32) {
    %c0_i32 = arith.constant 0 : i32
    %c0_i32_0 = arith.constant 0 : i32
    return %arg0, %c0_i32 : i32, i32
  }
  func.func @transform_1(%arg0: i32) -> (i32, i32) {
    %c0_i32 = arith.constant 0 : i32
    %c0_i32_0 = arith.constant 0 : i32
    return %arg0, %c0_i32 : i32, i32
  }
}

</mosaic_0001>

<llo_original>
// kernel: tpu_custom_call.1
$region0: #{tpu_custom_call.1}
  #allocation0 [shape = 'u32[]', space=smem, size = 0x4, offset = 0x4, fixed_abs, tag = 'smem constant byte address 0x4 - core index']
  #allocation1 [shape = 'u32[144,128]{1,0:T(1,128)}', space=vmem, size = 0x12000, scoped, tag = 'internal scratch']
  %s0 = inlined_call_operand.hbm [shape: f32[2,4], index: 0, kind: input, shape index: {}, may-alias: {0,1}]
  %s1 = inlined_call_operand.hbm [shape: f32[2,4], index: 1, kind: output, shape index: {}, may-alias: {0,1}]
  %s2 = sld [smem:[#allocation0]]
  $region18: #{tpu_custom_call.1} parent=0
    _
  %s4 = ssub.s32 1, %s2
  %s5 = scalar_select 0, %s4, %s2
  $region1: #{tpu_custom_call.1} parent=0
    #allocation2 [shape = 'u8[1024]{0}', space=vmem, size = 0x400, scoped, tag = 'input window, operand 0, single buffered']
    #allocation3 [shape = 's32[1]{0}', space=sflag, size = 0x4, scoped, tag = 'scoped memory for tpu_custom_call.1']
    #allocation4 [shape = 's32[1]{0}', space=sflag, size = 0x4, scoped, tag = 'scoped memory for tpu_custom_call.1']
    #allocation5 [shape = 'u8[1024]{0}', space=vmem, size = 0x400, scoped, tag = 'output window, operand 0, single buffered']
    %6 = vsyncpa [#allocation3], 0
    %7 = vsyncpa [#allocation4], 0
    // Predicated region
    $region2: #{tpu_custom_call.1} parent=1 // pred_check
      _
    $region3: #{tpu_custom_call.1} parent=1 // pred_check_branch
      %9 = sbr.rel (0) target = $region5
    $region4: #{tpu_custom_call.1} parent=1 // pred_region
      %s11 = ssub.s32 32, 32
      %12 = vsyncadd [#allocation3], %s11
      %s14 = sshll.u32 [#allocation2], 4
      %s15 = int_to_ptr.vmem [resolvable:$true] %s14
      %17 = dma.hbm_to_vmem [thread:$0]  %s0, 32, %s15, [#allocation3]
    $region5: #{tpu_custom_call.1} parent=1 // pred_fallthru
      _
    // Predicated region
    $region6: #{tpu_custom_call.1} parent=1 // pred_check
      _
    $region7: #{tpu_custom_call.1} parent=1 // pred_check_branch
      %19 = sbr.rel (0) target = $region9
    $region8: #{tpu_custom_call.1} parent=1 // pred_region
      %20 = dma.done [#allocation3], 32
    $region9: #{tpu_custom_call.1} parent=1 // pred_fallthru
      _
    %v21 = vld [vmem:[#allocation2] sm:$0x3]
    %vm22 = vcmask 25600
    %23 = vst.msk [vmem:[#allocation5] sm:$0x3] %vm22, %v21
    // Predicated region
    $region10: #{tpu_custom_call.1} parent=1 // pred_check
      _
    $region11: #{tpu_custom_call.1} parent=1 // pred_check_branch
      %25 = sbr.rel (0) target = $region13
    $region12: #{tpu_custom_call.1} parent=1 // pred_region
      %s27 = ssub.s32 32, 32
      %28 = vsyncadd [#allocation4], %s27
      %s30 = sshll.u32 [#allocation5], 4
      %s31 = int_to_ptr.vmem [resolvable:$true] %s30
      %33 = dma.vmem_to_hbm [thread:$0]  %s31, 32, %s1, [#allocation4]
    $region13: #{tpu_custom_call.1} parent=1 // pred_fallthru
      _
    // Predicated region
    $region14: #{tpu_custom_call.1} parent=1 // pred_check
      _
    $region15: #{tpu_custom_call.1} parent=1 // pred_check_branch
      %35 = sbr.rel (0) target = $region17
    $region16: #{tpu_custom_call.1} parent=1 // pred_region
      %36 = dma.done [#allocation4], 32
    $region17: #{tpu_custom_call.1} parent=1 // pred_fallthru
      _
    %37 = vsyncpa [#allocation3], 1
    %38 = vsyncpa [#allocation4], 1

</llo_original>
